<compile_context>
chip_gen: v7x
topology: tpu7x:2x2x1
jax: 0.10.0
libtpu: 0.0.40
codegen_flags: <defaults>
</compile_context>

<pallas_src>
import jax
import jax.numpy as jnp
from jax.experimental import pallas as pl
from jax.experimental.pallas import tpu as pltpu

HIDDEN = 64
OUTPUT = 8
MIN_STD = 0.02
SLAB = 128  # lane-dense output slab: h_new(64) | mean(8) | std(8) | z(8) | pad(40)


def _gaussian_gru_kernel(
    x_ref, noise_ref, h0_ref,
    w_rzn_ref, b_rzn_ref, w_head_ref, b_head_ref,
    out_ref,
    h_scratch,
):
    H, O = HIDDEN, OUTPUT
    t = pl.program_id(0)

    @pl.when(t == 0)
    def _():
        h_scratch[...] = h0_ref[...].astype(jnp.float32)

    x = x_ref[0].astype(jnp.float32)        # [B, H]
    h = h_scratch[...]                      # [B, H] f32 carry
    B = x.shape[0]

    # --- GRUCell: single K=2H MXU pass for all gate pre-activations ---
    # columns: [ r | z | x@W_in | h@W_hn ]   (PyTorch gate order r, z, n)
    xh = jnp.concatenate([x, h], axis=-1).astype(jnp.bfloat16)                # [B, 2H]
    gates = jnp.dot(xh, w_rzn_ref[...],
                    preferred_element_type=jnp.float32) + b_rzn_ref[...]      # [B, 4H] f32

    r = jax.nn.sigmoid(gates[:, 0:H])
    zg = jax.nn.sigmoid(gates[:, H:2 * H])
    n = jnp.tanh(gates[:, 2 * H:3 * H] + r * gates[:, 3 * H:4 * H])
    h_new = (1.0 - zg) * n + zg * h                                           # [B, H] f32

    # --- fused sufficient-stats heads (mu | logvar) in one N=2*O dot ---
    heads = jnp.dot(h_new.astype(jnp.bfloat16), w_head_ref[...],
                    preferred_element_type=jnp.float32) + b_head_ref[...]     # [B, 2O]
    mean = heads[:, 0:O]                                   # mean_act == 'none'
    std = 2.0 * jax.nn.sigmoid(heads[:, O:2 * O] * 0.5) + MIN_STD   # 'sigmoid2'
    z = mean + std * noise_ref[0].astype(jnp.float32)      # reparameterized sample

    h_scratch[...] = h_new

    # single lane-dense output slab per timestep
    pad = jnp.zeros((B, SLAB - (H + 3 * O)), jnp.float32)
    slab = jnp.concatenate([h_new, mean, std, z, pad], axis=-1)               # [B, 128]
    out_ref[0] = slab.astype(out_ref.dtype)


def pack_params(params):
    """Pack raw (PyTorch-layout, pre-transposed [in,out]) params into fused weights."""
    wih, whh, bih, bhh, wmu, bmu, wlv, blv = params
    H = HIDDEN
    zeros = jnp.zeros((H, H), jnp.float32)
    # rows 0:H multiply x, rows H:2H multiply h  (xh = [x | h])
    w_rzn = jnp.concatenate([
        jnp.concatenate([wih[:, 0:H],         whh[:, 0:H]],         axis=0),  # r
        jnp.concatenate([wih[:, H:2 * H],     whh[:, H:2 * H]],     axis=0),  # z
        jnp.concatenate([wih[:, 2 * H:3 * H], zeros],               axis=0),  # x @ W_in
        jnp.concatenate([zeros,               whh[:, 2 * H:3 * H]], axis=0),  # h @ W_hn
    ], axis=1)                                                                # [2H, 4H]
    b_rzn = jnp.concatenate([
        bih[:, 0:H] + bhh[:, 0:H],
        bih[:, H:2 * H] + bhh[:, H:2 * H],
        bih[:, 2 * H:3 * H],
        bhh[:, 2 * H:3 * H],          # stays separate so r * (h@W_hn + b_hn) is exact
    ], axis=1)                                                                # [1, 4H]
    w_head = jnp.concatenate([wmu, wlv], axis=1)                              # [H, 2O]
    b_head = jnp.concatenate([bmu, blv], axis=1)                              # [1, 2O]
    return (w_rzn.astype(jnp.bfloat16), b_rzn.astype(jnp.float32),
            w_head.astype(jnp.bfloat16), b_head.astype(jnp.float32))


def gaussian_gru_rollout(x_seq, h0, packed, noise_seq):
    """Runs T GaussianGRU steps in one pallas_call.

    x_seq:     [T, B, HIDDEN]
    h0:        [B, HIDDEN]
    noise_seq: [T, B, OUTPUT]  standard-normal noise for sampling
    returns (z[T,B,O], {'mean','std'} each [T,B,O], h_last[B,HIDDEN])
    """
    T, B, _ = x_seq.shape
    w_rzn, b_rzn, w_head, b_head = packed
    H, O = HIDDEN, OUTPUT

    slab = pl.pallas_call(
        _gaussian_gru_kernel,
        out_shape=jax.ShapeDtypeStruct((T, B, SLAB), jnp.float32),
        grid=(T,),
        in_specs=[
            pl.BlockSpec((1, B, H), lambda t: (t, 0, 0)),        # x_seq   (streamed)
            pl.BlockSpec((1, B, O), lambda t: (t, 0, 0)),        # noise   (streamed)
            pl.BlockSpec((B, H), lambda t: (0, 0)),              # h0      (resident)
            pl.BlockSpec((2 * H, 4 * H), lambda t: (0, 0)),      # w_rzn   (resident)
            pl.BlockSpec((1, 4 * H), lambda t: (0, 0)),          # b_rzn   (resident)
            pl.BlockSpec((H, 2 * O), lambda t: (0, 0)),          # w_head  (resident)
            pl.BlockSpec((1, 2 * O), lambda t: (0, 0)),          # b_head  (resident)
        ],
        out_specs=pl.BlockSpec((1, B, SLAB), lambda t: (t, 0, 0)),
        scratch_shapes=[pltpu.VMEM((B, H), jnp.float32)],        # hidden-state carry
        compiler_params=pltpu.CompilerParams(
            dimension_semantics=("arbitrary",)),                 # sequential recurrence
    )(x_seq, noise_seq, h0, w_rzn, b_rzn, w_head, b_head)

    h_seq = slab[:, :, 0:H]
    mean = slab[:, :, H:H + O]
    std = slab[:, :, H + O:H + 2 * O]
    z = slab[:, :, H + 2 * O:H + 3 * O]
    return z, {"mean": mean, "std": std}, h_seq[-1]


def gaussian_gru_step(x, h, packed, noise):
    """Single forward step (matches the PyTorch module's forward())."""
    z, stat, h_new = gaussian_gru_rollout(x[None], h, packed, noise[None])
    return z[0], {"mean": stat["mean"][0], "std": stat["std"][0]}, h_new


def init_params(key):
    """Deterministic parameter init mirroring the PyTorch module's shapes.

    GRU / Linear weights are stored pre-transposed as [in, out]; biases as
    [1, out] rows.
    """
    ks = jax.random.split(key, 8)
    bound = 1.0 / jnp.sqrt(HIDDEN)

    def u(k, shape):
        return jax.random.uniform(k, shape, jnp.float32, -bound, bound)

    wih = u(ks[0], (HIDDEN, 3 * HIDDEN))
    whh = u(ks[1], (HIDDEN, 3 * HIDDEN))
    bih = u(ks[2], (1, 3 * HIDDEN))
    bhh = u(ks[3], (1, 3 * HIDDEN))
    wmu = u(ks[4], (HIDDEN, OUTPUT))
    bmu = u(ks[5], (1, OUTPUT))
    wlv = u(ks[6], (HIDDEN, OUTPUT))
    blv = u(ks[7], (1, OUTPUT))
    return (wih, whh, bih, bhh, wmu, bmu, wlv, blv)


def _reference_rollout(x_seq, h0, packed, noise_seq):
    """Pure-JAX reference with matching precision (bf16 matmul inputs, f32 math)."""
    w_rzn, b_rzn, w_head, b_head = packed
    w_rzn = w_rzn.astype(jnp.float32)
    w_head = w_head.astype(jnp.float32)
    H, O = HIDDEN, OUTPUT
    h = h0.astype(jnp.float32)
    zs, ms, ss = [], [], []
    for t in range(x_seq.shape[0]):
        xh = jnp.concatenate([x_seq[t], h], axis=-1)
        xh = xh.astype(jnp.bfloat16).astype(jnp.float32)
        gates = xh @ w_rzn + b_rzn
        r = jax.nn.sigmoid(gates[:, 0:H])
        zg = jax.nn.sigmoid(gates[:, H:2 * H])
        n = jnp.tanh(gates[:, 2 * H:3 * H] + r * gates[:, 3 * H:4 * H])
        h = (1.0 - zg) * n + zg * h
        heads = h.astype(jnp.bfloat16).astype(jnp.float32) @ w_head + b_head
        mean = heads[:, 0:O]
        std = 2.0 * jax.nn.sigmoid(heads[:, O:2 * O] * 0.5) + MIN_STD
        zs.append(mean + std * noise_seq[t])
        ms.append(mean)
        ss.append(std)
    return jnp.stack(zs), jnp.stack(ms), jnp.stack(ss), h


if __name__ == "__main__":
    key = jax.random.PRNGKey(0)
    k_param, k_x, k_noise = jax.random.split(key, 3)

    T, B = 8, 2
    params = init_params(k_param)
    packed = pack_params(params)

    x_seq = jax.random.normal(k_x, (T, B, HIDDEN), jnp.float32)
    noise_seq = jax.random.normal(k_noise, (T, B, OUTPUT), jnp.float32)
    h0 = jnp.zeros((B, HIDDEN), jnp.float32)       # init_hidden -> zeros

    z, stat, h_last = gaussian_gru_rollout(x_seq, h0, packed, noise_seq)
    jax.block_until_ready((z, stat["mean"], stat["std"], h_last))

    assert z.shape == (T, B, OUTPUT)
    assert stat["mean"].shape == (T, B, OUTPUT)
    assert stat["std"].shape == (T, B, OUTPUT)
    assert h_last.shape == (B, HIDDEN)
    assert bool(jnp.all(stat["std"] > MIN_STD))

    # correctness vs precision-matched pure-JAX reference
    z_r, m_r, s_r, h_r = _reference_rollout(x_seq, h0, packed, noise_seq)
    assert bool(jnp.allclose(stat["mean"], m_r, atol=2e-3, rtol=2e-3))
    assert bool(jnp.allclose(stat["std"], s_r, atol=2e-3, rtol=2e-3))
    assert bool(jnp.allclose(z, z_r, atol=2e-3, rtol=2e-3))
    assert bool(jnp.allclose(h_last, h_r, atol=2e-3, rtol=2e-3))

    # single-step API (one call == one PyTorch forward())
    z1, stat1, h1 = gaussian_gru_step(x_seq[0], h0, packed, noise_seq[0])
    jax.block_until_ready((z1, h1))
    assert z1.shape == (B, OUTPUT) and h1.shape == (B, HIDDEN)

    print("KERNEL_OK")
</pallas_src>

<mosaic_0001>
module attributes {stable_mosaic.version = 11 : i64} {
  func.func @_gaussian_gru_kernel(%arg0: i32, %arg1: memref<1x2x64xf32, #tpu.memory_space<vmem>>, %arg2: memref<1x2x8xf32, #tpu.memory_space<vmem>>, %arg3: memref<2x64xf32, #tpu.memory_space<vmem>>, %arg4: memref<128x256xbf16, #tpu.memory_space<vmem>>, %arg5: memref<1x256xf32, #tpu.memory_space<vmem>>, %arg6: memref<64x16xbf16, #tpu.memory_space<vmem>>, %arg7: memref<1x16xf32, #tpu.memory_space<vmem>>, %arg8: memref<1x2x128xf32, #tpu.memory_space<vmem>>, %arg9: memref<2x64xf32, #tpu.memory_space<vmem>>) attributes {dimension_semantics = [#tpu.dimension_semantics<arbitrary>], iteration_bounds = array<i64: 8>, scalar_prefetch = 0 : i64, scratch_operands = 1 : i64, tpu.core_type = #tpu.core_type<tc>, window_params = [{transform_indices = @transform_0, window_bounds = array<i64: 1, 2, 64>}, {transform_indices = @transform_1, window_bounds = array<i64: 1, 2, 8>}, {pipeline_mode = #tpu.pipeline_mode<synchronous>, transform_indices = @transform_2, window_bounds = array<i64: 2, 64>}, {pipeline_mode = #tpu.pipeline_mode<synchronous>, transform_indices = @transform_3, window_bounds = array<i64: 128, 256>}, {pipeline_mode = #tpu.pipeline_mode<synchronous>, transform_indices = @transform_4, window_bounds = array<i64: 1, 256>}, {pipeline_mode = #tpu.pipeline_mode<synchronous>, transform_indices = @transform_5, window_bounds = array<i64: 64, 16>}, {pipeline_mode = #tpu.pipeline_mode<synchronous>, transform_indices = @transform_6, window_bounds = array<i64: 1, 16>}, {transform_indices = @transform_7, window_bounds = array<i64: 1, 2, 128>}]} {
    %c0_i32 = arith.constant 0 : i32
    %0 = arith.cmpi eq, %arg0, %c0_i32 : i32
    %1 = arith.extui %0 : i1 to i32
    %c0_i32_0 = arith.constant 0 : i32
    %2 = arith.cmpi ne, %1, %c0_i32_0 : i32
    scf.if %2 {
      %c0_30 = arith.constant 0 : index
      %c0_31 = arith.constant 0 : index
      %64 = vector.load %arg3[%c0_30, %c0_31] : memref<2x64xf32, #tpu.memory_space<vmem>>, vector<2x64xf32>
      %c0_32 = arith.constant 0 : index
      %c0_33 = arith.constant 0 : index
      %65 = vector.load %arg9[%c0_32, %c0_33] : memref<2x64xf32, #tpu.memory_space<vmem>>, vector<2x64xf32>
      tpu.vector_store %arg9[%c0_32, %c0_33], %64 {strides = array<i32>} : memref<2x64xf32, #tpu.memory_space<vmem>>, vector<2x64xf32>,
    } else {
    }
    %c0 = arith.constant 0 : index
    %c0_1 = arith.constant 0 : index
    %c0_2 = arith.constant 0 : index
    %3 = vector.load %arg1[%c0, %c0_1, %c0_2] : memref<1x2x64xf32, #tpu.memory_space<vmem>>, vector<1x2x64xf32>
    %4 = vector.shape_cast %3 : vector<1x2x64xf32> to vector<2x64xf32>
    %c0_3 = arith.constant 0 : index
    %c0_4 = arith.constant 0 : index
    %5 = vector.load %arg9[%c0_3, %c0_4] : memref<2x64xf32, #tpu.memory_space<vmem>>, vector<2x64xf32>
    %6 = tpu.concatenate %4, %5 in 1 : vector<2x64xf32>, vector<2x64xf32> -> vector<2x128xf32>
    %7 = arith.truncf %6 : vector<2x128xf32> to vector<2x128xbf16>
    %c0_5 = arith.constant 0 : index
    %c0_6 = arith.constant 0 : index
    %8 = vector.load %arg4[%c0_5, %c0_6] : memref<128x256xbf16, #tpu.memory_space<vmem>>, vector<128x256xbf16>
    %cst = arith.constant dense<0.000000e+00> : vector<2x256xf32>
    %9 = tpu.matmul %7, %8, %cst {dimension_numbers = #tpu.dot_dimension_numbers<[1], [0], [0], [1], [0, 0, 1, 1], [], []>} : vector<2x128xbf16>, vector<128x256xbf16>, vector<2x256xf32> -> vector<2x256xf32>
    %c0_7 = arith.constant 0 : index
    %c0_8 = arith.constant 0 : index
    %10 = vector.load %arg5[%c0_7, %c0_8] : memref<1x256xf32, #tpu.memory_space<vmem>>, vector<1x256xf32>
    %11 = vector.broadcast %10 : vector<1x256xf32> to vector<2x256xf32>
    %12 = arith.addf %9, %11 : vector<2x256xf32>
    %13 = vector.extract_strided_slice %12 {offsets = [0, 0], sizes = [2, 64], strides = [1, 1]} : vector<2x256xf32> to vector<2x64xf32>
    %14 = arith.negf %13 : vector<2x64xf32>
    %15 = math.exp %14 : vector<2x64xf32>
    %cst_9 = arith.constant 1.000000e+00 : f32
    %16 = vector.broadcast %cst_9 : f32 to vector<2x64xf32>
    %17 = arith.addf %16, %15 : vector<2x64xf32>
    %18 = arith.divf %16, %17 : vector<2x64xf32>
    %19 = vector.extract_strided_slice %12 {offsets = [0, 64], sizes = [2, 64], strides = [1, 1]} : vector<2x256xf32> to vector<2x64xf32>
    %20 = arith.negf %19 : vector<2x64xf32>
    %21 = math.exp %20 : vector<2x64xf32>
    %cst_10 = arith.constant 1.000000e+00 : f32
    %22 = vector.broadcast %cst_10 : f32 to vector<2x64xf32>
    %23 = arith.addf %22, %21 : vector<2x64xf32>
    %24 = arith.divf %22, %23 : vector<2x64xf32>
    %25 = vector.extract_strided_slice %12 {offsets = [0, 128], sizes = [2, 64], strides = [1, 1]} : vector<2x256xf32> to vector<2x64xf32>
    %26 = vector.extract_strided_slice %12 {offsets = [0, 192], sizes = [2, 64], strides = [1, 1]} : vector<2x256xf32> to vector<2x64xf32>
    %27 = arith.mulf %18, %26 : vector<2x64xf32>
    %28 = arith.addf %25, %27 : vector<2x64xf32>
    %29 = math.tanh %28 : vector<2x64xf32>
    %cst_11 = arith.constant 1.000000e+00 : f32
    %30 = vector.broadcast %cst_11 : f32 to vector<2x64xf32>
    %31 = arith.subf %30, %24 : vector<2x64xf32>
    %32 = arith.mulf %31, %29 : vector<2x64xf32>
    %33 = arith.mulf %24, %5 : vector<2x64xf32>
    %34 = arith.addf %32, %33 : vector<2x64xf32>
    %35 = arith.truncf %34 : vector<2x64xf32> to vector<2x64xbf16>
    %c0_12 = arith.constant 0 : index
    %c0_13 = arith.constant 0 : index
    %36 = vector.load %arg6[%c0_12, %c0_13] : memref<64x16xbf16, #tpu.memory_space<vmem>>, vector<64x16xbf16>
    %cst_14 = arith.constant dense<0.000000e+00> : vector<2x16xf32>
    %37 = tpu.matmul %35, %36, %cst_14 {dimension_numbers = #tpu.dot_dimension_numbers<[1], [0], [0], [1], [0, 0, 1, 1], [], []>} : vector<2x64xbf16>, vector<64x16xbf16>, vector<2x16xf32> -> vector<2x16xf32>
    %c0_15 = arith.constant 0 : index
    %c0_16 = arith.constant 0 : index
    %38 = vector.load %arg7[%c0_15, %c0_16] : memref<1x16xf32, #tpu.memory_space<vmem>>, vector<1x16xf32>
    %39 = vector.broadcast %38 : vector<1x16xf32> to vector<2x16xf32>
    %40 = arith.addf %37, %39 : vector<2x16xf32>
    %41 = vector.extract_strided_slice %40 {offsets = [0, 0], sizes = [2, 8], strides = [1, 1]} : vector<2x16xf32> to vector<2x8xf32>
    %42 = vector.extract_strided_slice %40 {offsets = [0, 8], sizes = [2, 8], strides = [1, 1]} : vector<2x16xf32> to vector<2x8xf32>
    %cst_17 = arith.constant 5.000000e-01 : f32
    %43 = vector.broadcast %cst_17 : f32 to vector<2x8xf32>
    %44 = arith.mulf %42, %43 : vector<2x8xf32>
    %45 = arith.negf %44 : vector<2x8xf32>
    %46 = math.exp %45 : vector<2x8xf32>
    %cst_18 = arith.constant 1.000000e+00 : f32
    %47 = vector.broadcast %cst_18 : f32 to vector<2x8xf32>
    %48 = arith.addf %47, %46 : vector<2x8xf32>
    %49 = arith.divf %47, %48 : vector<2x8xf32>
    %cst_19 = arith.constant 2.000000e+00 : f32
    %50 = vector.broadcast %cst_19 : f32 to vector<2x8xf32>
    %51 = arith.mulf %50, %49 : vector<2x8xf32>
    %cst_20 = arith.constant 2.000000e-02 : f32
    %52 = vector.broadcast %cst_20 : f32 to vector<2x8xf32>
    %53 = arith.addf %51, %52 : vector<2x8xf32>
    %c0_21 = arith.constant 0 : index
    %c0_22 = arith.constant 0 : index
    %c0_23 = arith.constant 0 : index
    %54 = vector.load %arg2[%c0_21, %c0_22, %c0_23] : memref<1x2x8xf32, #tpu.memory_space<vmem>>, vector<1x2x8xf32>
    %55 = vector.shape_cast %54 : vector<1x2x8xf32> to vector<2x8xf32>
    %56 = arith.mulf %53, %55 : vector<2x8xf32>
    %57 = arith.addf %41, %56 : vector<2x8xf32>
    %c0_24 = arith.constant 0 : index
    %c0_25 = arith.constant 0 : index
    %58 = vector.load %arg9[%c0_24, %c0_25] : memref<2x64xf32, #tpu.memory_space<vmem>>, vector<2x64xf32>
    tpu.vector_store %arg9[%c0_24, %c0_25], %34 {strides = array<i32>} : memref<2x64xf32, #tpu.memory_space<vmem>>, vector<2x64xf32>,
    %cst_26 = arith.constant 0.000000e+00 : f32
    %59 = vector.broadcast %cst_26 : f32 to vector<2x40xf32>
    %60 = tpu.concatenate %34, %41, %53, %57, %59 in 1 : vector<2x64xf32>, vector<2x8xf32>, vector<2x8xf32>, vector<2x8xf32>, vector<2x40xf32> -> vector<2x128xf32>
    %c0_27 = arith.constant 0 : index
    %c0_28 = arith.constant 0 : index
    %c0_29 = arith.constant 0 : index
    %61 = vector.load %arg8[%c0_27, %c0_28, %c0_29] : memref<1x2x128xf32, #tpu.memory_space<vmem>>, vector<1x2x128xf32>
    %62 = vector.shape_cast %61 : vector<1x2x128xf32> to vector<2x128xf32>
    %63 = vector.shape_cast %60 : vector<2x128xf32> to vector<1x2x128xf32>
    tpu.vector_store %arg8[%c0_27, %c0_28, %c0_29], %63 {strides = array<i32>} : memref<1x2x128xf32, #tpu.memory_space<vmem>>, vector<1x2x128xf32>,
    return
  }
  func.func @transform_0(%arg0: i32) -> (i32, i32, i32) {
    %c0_i32 = arith.constant 0 : i32
    %c0_i32_0 = arith.constant 0 : i32
    %c0_i32_1 = arith.constant 0 : i32
    return %arg0, %c0_i32, %c0_i32_0 : i32, i32, i32
  }
  func.func @transform_1(%arg0: i32) -> (i32, i32, i32) {
    %c0_i32 = arith.constant 0 : i32
    %c0_i32_0 = arith.constant 0 : i32
    %c0_i32_1 = arith.constant 0 : i32
    return %arg0, %c0_i32, %c0_i32_0 : i32, i32, i32
  }
  func.func @transform_2(%arg0: i32) -> (i32, i32) {
    %c0_i32 = arith.constant 0 : i32
    %c0_i32_0 = arith.constant 0 : i32
    %c0_i32_1 = arith.constant 0 : i32
    return %c0_i32, %c0_i32_0 : i32, i32
  }
  func.func @transform_3(%arg0: i32) -> (i32, i32) {
    %c0_i32 = arith.constant 0 : i32
    %c0_i32_0 = arith.constant 0 : i32
    %c0_i32_1 = arith.constant 0 : i32
    return %c0_i32, %c0_i32_0 : i32, i32
  }
  func.func @transform_4(%arg0: i32) -> (i32, i32) {
    %c0_i32 = arith.constant 0 : i32
    %c0_i32_0 = arith.constant 0 : i32
    %c0_i32_1 = arith.constant 0 : i32
    return %c0_i32, %c0_i32_0 : i32, i32
  }
  func.func @transform_5(%arg0: i32) -> (i32, i32) {
    %c0_i32 = arith.constant 0 : i32
    %c0_i32_0 = arith.constant 0 : i32
    %c0_i32_1 = arith.constant 0 : i32
    return %c0_i32, %c0_i32_0 : i32, i32
  }
  func.func @transform_6(%arg0: i32) -> (i32, i32) {
    %c0_i32 = arith.constant 0 : i32
    %c0_i32_0 = arith.constant 0 : i32
    %c0_i32_1 = arith.constant 0 : i32
    return %c0_i32, %c0_i32_0 : i32, i32
  }
  func.func @transform_7(%arg0: i32) -> (i32, i32, i32) {
    %c0_i32 = arith.constant 0 : i32
    %c0_i32_0 = arith.constant 0 : i32
    %c0_i32_1 = arith.constant 0 : i32
    return %arg0, %c0_i32, %c0_i32_0 : i32, i32, i32
  }
}

</mosaic_0001>

<llo_original>
// kernel: tpu_custom_call.1
$region0: #{tpu_custom_call.1}
  #allocation0 [shape = 'u32[]', space=smem, size = 0x4, offset = 0x4, fixed_abs, tag = 'smem constant byte address 0x4 - core index']
  #allocation1 [shape = 'u32[144,128]{1,0:T(1,128)}', space=vmem, size = 0x12000, scoped, tag = 'internal scratch']
  #allocation2 [shape = 'f32[2,64]{1,0:T(2,128)}', space=vmem, size = 0x400, scoped, tag = 'scratch operand']
  %s0 = inlined_call_operand.vmem [shape: f32[8,2,64], index: 0, kind: input, shape index: {}]
  %s1 = inlined_call_operand.vmem [shape: f32[8,2,8], index: 1, kind: input, shape index: {}]
  %s2 = inlined_call_operand.vmem [shape: f32[2,64], index: 2, kind: input, shape index: {}]
  %s3 = inlined_call_operand.hbm [shape: bf16[128,256], index: 3, kind: input, shape index: {}]
  %s4 = inlined_call_operand.vmem [shape: f32[1,256], index: 4, kind: input, shape index: {}]
  %s5 = inlined_call_operand.vmem [shape: bf16[64,16], index: 5, kind: input, shape index: {}]
  %s6 = inlined_call_operand.vmem [shape: f32[1,16], index: 6, kind: input, shape index: {}]
  %s7 = inlined_call_operand.hbm [shape: f32[8,2,128], index: 7, kind: output, shape index: {}]
  %s8 = sld [smem:[#allocation0]]
  $region69: #{tpu_custom_call.1} parent=0
    _
  %s10 = ssub.s32 1, %s8
  %s11 = scalar_select 0, %s10, %s8
  $region1: #{tpu_custom_call.1} parent=0
    #allocation3 [shape = 'u8[65536]{0}', space=vmem, size = 0x10000, scoped, tag = 'input window, operand 3, single buffered']
    #allocation4 [shape = 's32[2]{0}', space=sflag, size = 0x8, scoped, tag = 'scoped memory for tpu_custom_call.1']
    #allocation5 [shape = 's32[2]{0}', space=sflag, size = 0x8, scoped, tag = 'scoped memory for tpu_custom_call.1']
    #allocation6 [shape = 'u8[2048]{0}', space=vmem, size = 0x800, scoped, tag = 'output window, operand 0']
    %12 = vsyncpa [#allocation4], 0
    %13 = vsyncpa [#allocation5], 0
    %s14 = scalar_lea.sflag [#allocation5], 1
    %15 = vsyncpa %s14, 0
    loop: start=0, step=1, limit=10
    $region2: #{tpu_custom_call.1} parent=1 // loop_pre_header
      _
    $region3: #{tpu_custom_call.1} parent=1 // loop_header
      %s17 = sphi 0, %s21
      %p18 = scmp.ge.s32.totalorder %s17, 10
      %s27 = sphi 0, %s29
      %s30 = sphi 0, %s27
      %s31 = sphi 0, %s30
      %s47 = sphi 0, %s31
      %s53 = sphi 0, %s55
      %s56 = sphi 0, %s53
      %s57 = sphi 0, %s56
      %s73 = sphi 0, %s57
      %s77 = sphi 0, %s77
      %s79 = sphi 0, %s77
      %s80 = sphi 0, %s79
      %s94 = sphi 0, %s80
      %s98 = sphi 0, %s98
      %s100 = sphi 0, %s98
      %s101 = sphi 0, %s100
      %s115 = sphi 0, %s101
      %s119 = sphi 0, %s119
      %s121 = sphi 0, %s119
      %s122 = sphi 0, %s121
      %s136 = sphi 0, %s122
      %s140 = sphi 0, %s140
      %s142 = sphi 0, %s140
      %s143 = sphi 0, %s142
      %s157 = sphi 0, %s143
      %s161 = sphi 0, %s161
      %s163 = sphi 0, %s161
      %s164 = sphi 0, %s163
      %s178 = sphi 0, %s164
      %s184 = sphi 0, %s186
      %s187 = sphi 0, %s184
      %s188 = sphi 0, %s187
      %s204 = sphi 0, %s188
    $region4: #{tpu_custom_call.1} parent=1 // loop_header_branch
      %20 = sbr.rel (%p18) target = $region8
    $region5: #{tpu_custom_call.1} parent=1 // loop_body
      %s22 = ssub.s32 %s17, 1
      %s23 = ssub.s32 %s17, 2
      %s24 = sadd.s32 %s17, 1
      %s25 = ssub.s32 %s17, %s24
      %p26 = scmp.eq.s32.totalorder %s25, 0
      %s28 = sadd.s32 %s27, 1
      %s29 = scalar_select %p26, %s27, %s28
      %p32 = pneg %p26
      %p33 = scmp.eq.s32.totalorder %s17, 7
      %p34 = por %p32, %p33
      %p35 = scmp.ne.s32.totalorder %s27, %s30
      %p36 = scmp.eq.s32.totalorder %s17, 0
      %p37 = por %p35, %p36
      %p38 = scmp.ne.s32.totalorder %s27, %s30
      %p39 = scmp.eq.s32.totalorder %s22, 7
      %p40 = por %p38, %p39
      %p41 = scmp.ne.s32.totalorder %s30, %s31
      %p42 = scmp.eq.s32.totalorder %s22, 0
      %p43 = por %p41, %p42
      %p44 = scmp.ne.s32.totalorder %s30, %s31
      %p45 = scmp.eq.s32.totalorder %s23, 7
      %p46 = por %p44, %p45
      %p48 = scmp.ne.s32.totalorder %s31, %s47
      %p49 = scmp.eq.s32.totalorder %s23, 0
      %p50 = por %p48, %p49
      %s51 = ssub.s32 %s17, %s24
      %p52 = scmp.eq.s32.totalorder %s51, 0
      %s54 = sadd.s32 %s53, 1
      %s55 = scalar_select %p52, %s53, %s54
      %p58 = pneg %p52
      %p59 = scmp.eq.s32.totalorder %s17, 7
      %p60 = por %p58, %p59
      %p61 = scmp.ne.s32.totalorder %s53, %s56
      %p62 = scmp.eq.s32.totalorder %s17, 0
      %p63 = por %p61, %p62
      %p64 = scmp.ne.s32.totalorder %s53, %s56
      %p65 = scmp.eq.s32.totalorder %s22, 7
      %p66 = por %p64, %p65
      %p67 = scmp.ne.s32.totalorder %s56, %s57
      %p68 = scmp.eq.s32.totalorder %s22, 0
      %p69 = por %p67, %p68
      %p70 = scmp.ne.s32.totalorder %s56, %s57
      %p71 = scmp.eq.s32.totalorder %s23, 7
      %p72 = por %p70, %p71
      %p74 = scmp.ne.s32.totalorder %s57, %s73
      %p75 = scmp.eq.s32.totalorder %s23, 0
      %p76 = por %p74, %p75
      %s78 = sadd.s32 %s77, 1
      %p81 = scmp.eq.s32.totalorder %s17, 7
      %p82 = scmp.ne.s32.totalorder %s77, %s79
      %p83 = scmp.eq.s32.totalorder %s17, 0
      %p84 = por %p82, %p83
      %p85 = scmp.ne.s32.totalorder %s77, %s79
      %p86 = scmp.eq.s32.totalorder %s22, 7
      %p87 = por %p85, %p86
      %p88 = scmp.ne.s32.totalorder %s79, %s80
      %p89 = scmp.eq.s32.totalorder %s22, 0
      %p90 = por %p88, %p89
      %p91 = scmp.ne.s32.totalorder %s79, %s80
      %p92 = scmp.eq.s32.totalorder %s23, 7
      %p93 = por %p91, %p92
      %p95 = scmp.ne.s32.totalorder %s80, %s94
      %p96 = scmp.eq.s32.totalorder %s23, 0
      %p97 = por %p95, %p96
      %s99 = sadd.s32 %s98, 1
      %p102 = scmp.eq.s32.totalorder %s17, 7
      %p103 = scmp.ne.s32.totalorder %s98, %s100
      %p104 = scmp.eq.s32.totalorder %s17, 0
      %p105 = por %p103, %p104
      %p106 = scmp.ne.s32.totalorder %s98, %s100
      %p107 = scmp.eq.s32.totalorder %s22, 7
      %p108 = por %p106, %p107
      %p109 = scmp.ne.s32.totalorder %s100, %s101
      %p110 = scmp.eq.s32.totalorder %s22, 0
      %p111 = por %p109, %p110
      %p112 = scmp.ne.s32.totalorder %s100, %s101
      %p113 = scmp.eq.s32.totalorder %s23, 7
      %p114 = por %p112, %p113
      %p116 = scmp.ne.s32.totalorder %s101, %s115
      %p117 = scmp.eq.s32.totalorder %s23, 0
      %p118 = por %p116, %p117
      %s120 = sadd.s32 %s119, 1
      %p123 = scmp.eq.s32.totalorder %s17, 7
      %p124 = scmp.ne.s32.totalorder %s119, %s121
      %p125 = scmp.eq.s32.totalorder %s17, 0
      %p126 = por %p124, %p125
      %p127 = scmp.ne.s32.totalorder %s119, %s121
      %p128 = scmp.eq.s32.totalorder %s22, 7
      %p129 = por %p127, %p128
      %p130 = scmp.ne.s32.totalorder %s121, %s122
      %p131 = scmp.eq.s32.totalorder %s22, 0
      %p132 = por %p130, %p131
      %p133 = scmp.ne.s32.totalorder %s121, %s122
      %p134 = scmp.eq.s32.totalorder %s23, 7
      %p135 = por %p133, %p134
      %p137 = scmp.ne.s32.totalorder %s122, %s136
      %p138 = scmp.eq.s32.totalorder %s23, 0
      %p139 = por %p137, %p138
      %s141 = sadd.s32 %s140, 1
      %p144 = scmp.eq.s32.totalorder %s17, 7
      %p145 = scmp.ne.s32.totalorder %s140, %s142
      %p146 = scmp.eq.s32.totalorder %s17, 0
      %p147 = por %p145, %p146
      %p148 = scmp.ne.s32.totalorder %s140, %s142
      %p149 = scmp.eq.s32.totalorder %s22, 7
      %p150 = por %p148, %p149
      %p151 = scmp.ne.s32.totalorder %s142, %s143
      %p152 = scmp.eq.s32.totalorder %s22, 0
      %p153 = por %p151, %p152
      %p154 = scmp.ne.s32.totalorder %s142, %s143
      %p155 = scmp.eq.s32.totalorder %s23, 7
      %p156 = por %p154, %p155
      %p158 = scmp.ne.s32.totalorder %s143, %s157
      %p159 = scmp.eq.s32.totalorder %s23, 0
      %p160 = por %p158, %p159
      %s162 = sadd.s32 %s161, 1
      %p165 = scmp.eq.s32.totalorder %s17, 7
      %p166 = scmp.ne.s32.totalorder %s161, %s163
      %p167 = scmp.eq.s32.totalorder %s17, 0
      %p168 = por %p166, %p167
      %p169 = scmp.ne.s32.totalorder %s161, %s163
      %p170 = scmp.eq.s32.totalorder %s22, 7
      %p171 = por %p169, %p170
      %p172 = scmp.ne.s32.totalorder %s163, %s164
      %p173 = scmp.eq.s32.totalorder %s22, 0
      %p174 = por %p172, %p173
      %p175 = scmp.ne.s32.totalorder %s163, %s164
      %p176 = scmp.eq.s32.totalorder %s23, 7
      %p177 = por %p175, %p176
      %p179 = scmp.ne.s32.totalorder %s164, %s178
      %p180 = scmp.eq.s32.totalorder %s23, 0
      %p181 = por %p179, %p180
      %s182 = ssub.s32 %s17, %s24
      %p183 = scmp.eq.s32.totalorder %s182, 0
      %s185 = sadd.s32 %s184, 1
      %s186 = scalar_select %p183, %s184, %s185
      %p189 = pneg %p183
      %p190 = scmp.eq.s32.totalorder %s17, 7
      %p191 = por %p189, %p190
      %p192 = scmp.ne.s32.totalorder %s184, %s187
      %p193 = scmp.eq.s32.totalorder %s17, 0
      %p194 = por %p192, %p193
      %p195 = scmp.ne.s32.totalorder %s184, %s187
      %p196 = scmp.eq.s32.totalorder %s22, 7
      %p197 = por %p195, %p196
      %p198 = scmp.ne.s32.totalorder %s187, %s188
      %p199 = scmp.eq.s32.totalorder %s22, 0
      %p200 = por %p198, %p199
      %p201 = scmp.ne.s32.totalorder %s187, %s188
      %p202 = scmp.eq.s32.totalorder %s23, 7
      %p203 = por %p201, %p202
      %p205 = scmp.ne.s32.totalorder %s188, %s204
      %p206 = scmp.eq.s32.totalorder %s23, 0
      %p207 = por %p205, %p206
      %p208 = scmp.le.s32.totalorder 1, %s17
      %p209 = scmp.lt.s32.totalorder %s17, 9
      %p210 = pnand %p208, %p209
      %p211 = pneg %p210
      // Predicated region
      $region9: #{tpu_custom_call.1} parent=5 // pred_check
        _
      $region10: #{tpu_custom_call.1} parent=5 // pred_check_branch
        %213 = sbr.rel (%p210) target = $region12
      $region11: #{tpu_custom_call.1} parent=5 // pred_region
        %s214 = ssub.s32 %s17, 1
        // Predicated region
        $region13: #{tpu_custom_call.1} parent=11 // pred_check
          %p215 = pneg %p90
        $region14: #{tpu_custom_call.1} parent=11 // pred_check_branch
          %217 = sbr.rel (%p215) target = $region16
        $region15: #{tpu_custom_call.1} parent=11 // pred_region
          _
        $region16: #{tpu_custom_call.1} parent=11 // pred_fallthru
          _
        // Predicated region
        $region17: #{tpu_custom_call.1} parent=11 // pred_check
          %p218 = pneg %p111
        $region18: #{tpu_custom_call.1} parent=11 // pred_check_branch
          %220 = sbr.rel (%p218) target = $region20
        $region19: #{tpu_custom_call.1} parent=11 // pred_region
          %s222 = ssub.s32 2048, 2048
          %223 = vsyncadd [#allocation4], %s222
          %s224 = sshll.u32 [#allocation3], 4
          %s225 = int_to_ptr.vmem [resolvable:$true] %s224
          %230 = dma.hbm_to_vmem [thread:$0]  %s3, 2048, %s225, [#allocation4], 128, 128, 8
        $region20: #{tpu_custom_call.1} parent=11 // pred_fallthru
          _
        // Predicated region
        $region21: #{tpu_custom_call.1} parent=11 // pred_check
          %p231 = pneg %p132
        $region22: #{tpu_custom_call.1} parent=11 // pred_check_branch
          %233 = sbr.rel (%p231) target = $region24
        $region23: #{tpu_custom_call.1} parent=11 // pred_region
          _
        $region24: #{tpu_custom_call.1} parent=11 // pred_fallthru
          _
        // Predicated region
        $region25: #{tpu_custom_call.1} parent=11 // pred_check
          %p234 = pneg %p153
        $region26: #{tpu_custom_call.1} parent=11 // pred_check_branch
          %236 = sbr.rel (%p234) target = $region28
        $region27: #{tpu_custom_call.1} parent=11 // pred_region
          _
        $region28: #{tpu_custom_call.1} parent=11 // pred_fallthru
          _
        // Predicated region
        $region29: #{tpu_custom_call.1} parent=11 // pred_check
          %p237 = pneg %p174
        $region30: #{tpu_custom_call.1} parent=11 // pred_check_branch
          %239 = sbr.rel (%p237) target = $region32
        $region31: #{tpu_custom_call.1} parent=11 // pred_region
          _
        $region32: #{tpu_custom_call.1} parent=11 // pred_fallthru
          _
      $region12: #{tpu_custom_call.1} parent=5 // pred_fallthru
        _
      %p240 = scmp.lt.s32.totalorder %s17, 8
      // Predicated region
      $region33: #{tpu_custom_call.1} parent=5 // pred_check
        %p241 = pneg %p240
      $region34: #{tpu_custom_call.1} parent=5 // pred_check_branch
        %243 = sbr.rel (%p241) target = $region36
      $region35: #{tpu_custom_call.1} parent=5 // pred_region
        // Predicated region
        $region37: #{tpu_custom_call.1} parent=35 // pred_check
          %p244 = pneg %p37
        $region38: #{tpu_custom_call.1} parent=35 // pred_check_branch
          %246 = sbr.rel (%p244) target = $region40
        $region39: #{tpu_custom_call.1} parent=35 // pred_region
          %p247 = scmp.lt.s32.totalorder %s17, 7
          %s248 = scalar_select %p247, %s17, 7
          %s249 = smul.addr %s248, 2
          %s250 = scalar_lea.vmem %s0, %s249
        $region40: #{tpu_custom_call.1} parent=35 // pred_fallthru
          _
        // Predicated region
        $region41: #{tpu_custom_call.1} parent=35 // pred_check
          %p251 = pneg %p63
        $region42: #{tpu_custom_call.1} parent=35 // pred_check_branch
          %253 = sbr.rel (%p251) target = $region44
        $region43: #{tpu_custom_call.1} parent=35 // pred_region
          %p254 = scmp.lt.s32.totalorder %s17, 7
          %s255 = scalar_select %p254, %s17, 7
          %s256 = smul.addr %s255, 2
          %s257 = scalar_lea.vmem %s1, %s256
        $region44: #{tpu_custom_call.1} parent=35 // pred_fallthru
          _
      $region36: #{tpu_custom_call.1} parent=5 // pred_fallthru
        _
      %p258 = scmp.le.s32.totalorder 1, %s17
      %p259 = scmp.lt.s32.totalorder %s17, 9
      %p260 = pnand %p258, %p259
      %p261 = pneg %p260
      // Predicated region
      $region45: #{tpu_custom_call.1} parent=5 // pred_check
        _
      $region46: #{tpu_custom_call.1} parent=5 // pred_check_branch
        %263 = sbr.rel (%p260) target = $region48
      $region47: #{tpu_custom_call.1} parent=5 // pred_region
        %s264 = ssub.s32 %s17, 1
        // Predicated region
        $region49: #{tpu_custom_call.1} parent=47 // pred_check
          %p265 = pneg %p111
        $region50: #{tpu_custom_call.1} parent=47 // pred_check_branch
          %267 = sbr.rel (%p265) target = $region52
        $region51: #{tpu_custom_call.1} parent=47 // pred_region
          %268 = dma.done [#allocation4], 2048
        $region52: #{tpu_custom_call.1} parent=47 // pred_fallthru
          _
        %p269 = scmp.lt.s32.totalorder %s22, 7
        %s270 = scalar_select %p269, %s22, 7
        %s271 = smul.addr %s270, 2
        %s272 = scalar_lea.vmem %s0, %s271
        %p273 = pneg %p43
        %p274 = pneg %p40
        %p275 = scmp.lt.s32.totalorder %s22, 7
        %s276 = scalar_select %p275, %s22, 7
        %s277 = smul.addr %s276, 2
        %s278 = scalar_lea.vmem %s1, %s277
        %p279 = pneg %p69
        %p280 = pneg %p66
        %p281 = pneg %p90
        %p282 = pneg %p87
        %p283 = pneg %p111
        %p284 = pneg %p108
        %p285 = pneg %p132
        %p286 = pneg %p129
        %p287 = pneg %p153
        %p288 = pneg %p150
        %p289 = pneg %p174
        %p290 = pneg %p171
        %p291 = pneg %p200
        %p292 = pneg %p197
        %s293 = sand.u32 %s187, 1
        %s294 = scalar_lea.sflag [#allocation5], %s293
        %s295 = sand.u32 %s187, 1
        %s296 = smul.addr %s295, 2
        %s297 = scalar_lea.vmem [#allocation6], %s296
        %p298 = scmp.lt.s32.totalorder %s22, 7
        %s299 = scalar_select %p298, %s22, 7
        %s300 = smul.addr %s299, 2
        %s301 = scalar_lea.vmem %s0, %s300
        %p302 = scmp.lt.s32.totalorder %s22, 7
        %s303 = scalar_select %p302, %s22, 7
        %s304 = smul.addr %s303, 2
        %s305 = scalar_lea.vmem %s1, %s304
        %p307 = scmp.eq.s32.totalorder %s22, 0
        // Predicated region
        $region53: #{tpu_custom_call.1} parent=47 // pred_check
          %p308 = pneg %p307
        $region54: #{tpu_custom_call.1} parent=47 // pred_check_branch
          %310 = sbr.rel (%p308) target = $region56
        $region55: #{tpu_custom_call.1} parent=47 // pred_region
          %v311 = vld [vmem:[%s2] sm:$0x3]
          %vm312 = vcmask 517120
          %313 = vst.msk [vmem:[#allocation2] sm:$0x3] %vm312, %v311
        $region56: #{tpu_custom_call.1} parent=47 // pred_fallthru
          _
        %v314 = vld [vmem:[%s301] sm:$0x3]
        %v315 = vld [vmem:[#allocation2] sm:$0x3]
        %317 = vrot.lane.b32.xlu0 %v315, 64
        %v318 = vpop.permute.xlu0 %317
        %vm320 = vcmask 523264
        %v321 = vsel %vm320, %v314, %v318
        %v322 = vpack.c.bf16 %v321, %v321
        %v323 = vld [vmem:[#allocation3] sm:$0xff]
        %v324 = vld [vmem:[#allocation3 + $0x8] sm:$0xff]
        %v325 = vld [vmem:[#allocation3 + $0x10] sm:$0xff]
        %v326 = vld [vmem:[#allocation3 + $0x18] sm:$0xff]
        %v327 = vld [vmem:[#allocation3 + $0x20] sm:$0xff]
        %v328 = vld [vmem:[#allocation3 + $0x28] sm:$0xff]
        %v329 = vld [vmem:[#allocation3 + $0x30] sm:$0xff]
        %v330 = vld [vmem:[#allocation3 + $0x38] sm:$0xff]
        %v331 = vld [vmem:[#allocation3 + $0x40] sm:$0xff]
        %v332 = vld [vmem:[#allocation3 + $0x48] sm:$0xff]
        %v333 = vld [vmem:[#allocation3 + $0x50] sm:$0xff]
        %v334 = vld [vmem:[#allocation3 + $0x58] sm:$0xff]
        %v335 = vld [vmem:[#allocation3 + $0x60] sm:$0xff]
        %v336 = vld [vmem:[#allocation3 + $0x68] sm:$0xff]
        %v337 = vld [vmem:[#allocation3 + $0x70] sm:$0xff]
        %v338 = vld [vmem:[#allocation3 + $0x78] sm:$0xff]
        %v339 = vld [vmem:[%s4] sm:$0x3]
        %v341 = vlaneseq
        %v342 = vshrl.u32 %v341, 7
        %v343 = vsub.s32 0, %v342
        %v344 = vrot.slane %v339, %v343
        %v345 = vlaneseq
        %v346 = vshrl.u32 %v345, 7
        %v347 = vsub.s32 1, %v346
        %v348 = vrot.slane %v339, %v347
        %v367 = vunpack.c.l.b16 %v323
        %v368 = vunpack.c.h.b16 %v323
        %v369 = vunpack.c.l.b16 %v324
        %v370 = vunpack.c.h.b16 %v324
        %v371 = vunpack.c.l.b16 %v325
        %v372 = vunpack.c.h.b16 %v325
        %v373 = vunpack.c.l.b16 %v326
        %v374 = vunpack.c.h.b16 %v326
        %v375 = vunpack.c.l.b16 %v327
        %v376 = vunpack.c.h.b16 %v327
        %v377 = vunpack.c.l.b16 %v328
        %v378 = vunpack.c.h.b16 %v328
        %v379 = vunpack.c.l.b16 %v329
        %v380 = vunpack.c.h.b16 %v329
        %v381 = vunpack.c.l.b16 %v330
        %v382 = vunpack.c.h.b16 %v330
        %v383 = vunpack.c.l.b16 %v331
        %v384 = vunpack.c.h.b16 %v331
        %v385 = vunpack.c.l.b16 %v332
        %v386 = vunpack.c.h.b16 %v332
        %v387 = vunpack.c.l.b16 %v333
        %v388 = vunpack.c.h.b16 %v333
        %v389 = vunpack.c.l.b16 %v334
        %v390 = vunpack.c.h.b16 %v334
        %v391 = vunpack.c.l.b16 %v335
        %v392 = vunpack.c.h.b16 %v335
        %v393 = vunpack.c.l.b16 %v336
        %v394 = vunpack.c.h.b16 %v336
        %v395 = vunpack.c.l.b16 %v337
        %v396 = vunpack.c.h.b16 %v337
        %v397 = vunpack.c.l.b16 %v338
        %v398 = vunpack.c.h.b16 %v338
        %v399 = vpack.c.b16 %v369, %v367
        %v400 = vpack.c.b16 %v370, %v368
        %v401 = vpack.c.b16 %v373, %v371
        %v402 = vpack.c.b16 %v374, %v372
        %v403 = vpack.c.b16 %v377, %v375
        %v404 = vpack.c.b16 %v378, %v376
        %v405 = vpack.c.b16 %v381, %v379
        %v406 = vpack.c.b16 %v382, %v380
        %v407 = vpack.c.b16 %v385, %v383
        %v408 = vpack.c.b16 %v386, %v384
        %v409 = vpack.c.b16 %v389, %v387
        %v410 = vpack.c.b16 %v390, %v388
        %v411 = vpack.c.b16 %v393, %v391
        %v412 = vpack.c.b16 %v394, %v392
        %v413 = vpack.c.b16 %v397, %v395
        %v414 = vpack.c.b16 %v398, %v396
        %431 = vmatprep.subr.bf16.mxu0 %v400
        %432 = vmatpush1.bf16.msra.mxu0 %v399
        %433 = vmatprep.subr.bf16.mxu0 %v402
        %434 = vmatpush1.bf16.msra.mxu0 %v401
        %435 = vmatprep.subr.bf16.mxu0 %v404
        %436 = vmatpush1.bf16.msra.mxu0 %v403
        %437 = vmatprep.subr.bf16.mxu0 %v406
        %438 = vmatpush1.bf16.msra.mxu0 %v405
        %439 = vmatprep.subr.bf16.mxu0 %v408
        %440 = vmatpush1.bf16.msra.mxu0 %v407
        %441 = vmatprep.subr.bf16.mxu0 %v410
        %442 = vmatpush1.bf16.msra.mxu0 %v409
        %443 = vmatprep.subr.bf16.mxu0 %v412
        %444 = vmatpush1.bf16.msra.mxu0 %v411
        %445 = vmatprep.subr.bf16.mxu0 %v414
        %446 = vmatpush1.bf16.msra.mxu0 %v413
        %447 = vmatprep.subr.bf16.mxu0 0
        %448 = vmatpush1.bf16.msra.mxu0 0
        %449 = vmatprep.subr.bf16.mxu0 0
        %450 = vmatpush1.bf16.msra.mxu0 0
        %451 = vmatprep.subr.bf16.mxu0 0
        %452 = vmatpush1.bf16.msra.mxu0 0
        %453 = vmatprep.subr.bf16.mxu0 0
        %454 = vmatpush1.bf16.msra.mxu0 0
        %455 = vmatprep.subr.bf16.mxu0 0
        %456 = vmatpush1.bf16.msra.mxu0 0
        %457 = vmatprep.subr.bf16.mxu0 0
        %458 = vmatpush1.bf16.msra.mxu0 0
        %459 = vmatprep.subr.bf16.mxu0 0
        %460 = vmatpush1.bf16.msra.mxu0 0
        %461 = vmatprep.subr.bf16.mxu0 0
        %462 = vmatpush1.bf16.msra.mxu0 0
        %463 = vmatprep.mubr.bf16.mxu0 0
        %464 = vmatmul.mubr.bf16.gmra.mrb[0].mxu0 %v322
        %v465 = vpop.f32.mrb[0].mxu0
        %v466 = vadd.f32 %v344, %v465
        %v467 = vpop.f32.mrb[0].mxu0
        %v468 = vadd.f32 %v348, %v467
        %v469 = vpop.f32.mrb[0].mxu0
        %v470 = vpop.f32.mrb[0].mxu0
        %471 = vdwg.mxu0
        %v472 = vxor.u32 %v466, 2147483648
        %v473 = vmul.f32 %v472, 1.442695
        %v474 = vpow.pop %v473
        %v475 = vadd.f32 %v474, 1.0
        %v476 = vrcp.pop %v475
        %v477 = vmul.f32 1.0, %v476
        %479 = vrot.lane.b32.xlu0 %v468, 64
        %v480 = vpop.permute.xlu0 %479
        %v482 = vmul.f32 %v477, %v480
        %v483 = vadd.f32 %v468, %v482
        %v484 = vtanh.pop %v483
        %v485 = vsub.f32 1.0, %v477
        %487 = vrot.lane.b32.xlu0 %v484, 64
        %v488 = vpop.permute.xlu0 %487
        %v490 = vmul.f32 %v485, %v488
        %v491 = vmul.f32 %v477, %v318
        %v492 = vadd.f32 %v490, %v491
        %v493 = vpack.c.bf16 %v492, %v492
        %v494 = vld [vmem:[%s5] sm:$0xf]
        %v495 = vld [vmem:[%s5 + $0x4] sm:$0xf]
        %v496 = vld [vmem:[%s5 + $0x8] sm:$0xf]
        %v497 = vld [vmem:[%s5 + $0xc] sm:$0xf]
        %v498 = vld [vmem:[%s5 + $0x10] sm:$0xf]
        %v499 = vld [vmem:[%s5 + $0x14] sm:$0xf]
        %v500 = vld [vmem:[%s5 + $0x18] sm:$0xf]
        %v501 = vld [vmem:[%s5 + $0x1c] sm:$0xf]
        %v502 = vld [vmem:[%s6] sm:$0x1]
        %v504 = vlaneseq
        %v505 = vshrl.u32 %v504, 7
        %v506 = vsub.s32 0, %v505
        %v507 = vrot.slane %v502, %v506
        %510 = vrot.lane.b32.xlu0 %v493, 64
        %v511 = vpop.permute.xlu0 %510
        %v520 = vunpack.c.l.b16 %v494
        %v521 = vunpack.c.l.b16 %v495
        %v522 = vunpack.c.l.b16 %v496
        %v523 = vunpack.c.l.b16 %v497
        %v524 = vunpack.c.l.b16 %v498
        %v525 = vunpack.c.l.b16 %v499
        %v526 = vunpack.c.l.b16 %v500
        %v527 = vunpack.c.l.b16 %v501
        %v528 = vpack.c.b16 %v521, %v520
        %v529 = vpack.c.b16 %v523, %v522
        %v530 = vpack.c.b16 %v525, %v524
        %v531 = vpack.c.b16 %v527, %v526
        %v537 = vsel %vm320, %v511, 0
        %539 = vmatprep.subr.bf16.mxu0 0
        %540 = vmatpush1.bf16.msra.mxu0 %v528
        %541 = vmatprep.subr.bf16.mxu0 0
        %542 = vmatpush1.bf16.msra.mxu0 %v529
        %543 = vmatprep.subr.bf16.mxu0 0
        %544 = vmatpush1.bf16.msra.mxu0 %v530
        %545 = vmatprep.subr.bf16.mxu0 0
        %546 = vmatpush1.bf16.msra.mxu0 %v531
        %547 = vmatprep.subr.bf16.mxu0 0
        %548 = vmatpush1.bf16.msra.mxu0 0
        %549 = vmatprep.subr.bf16.mxu0 0
        %550 = vmatpush1.bf16.msra.mxu0 0
        %551 = vmatprep.subr.bf16.mxu0 0
        %552 = vmatpush1.bf16.msra.mxu0 0
        %553 = vmatprep.subr.bf16.mxu0 0
        %554 = vmatpush1.bf16.msra.mxu0 0
        %555 = vmatprep.subr.bf16.mxu0 0
        %556 = vmatpush1.bf16.msra.mxu0 0
        %557 = vmatprep.subr.bf16.mxu0 0
        %558 = vmatpush1.bf16.msra.mxu0 0
        %559 = vmatprep.subr.bf16.mxu0 0
        %560 = vmatpush1.bf16.msra.mxu0 0
        %561 = vmatprep.subr.bf16.mxu0 0
        %562 = vmatpush1.bf16.msra.mxu0 0
        %563 = vmatprep.subr.bf16.mxu0 0
        %564 = vmatpush1.bf16.msra.mxu0 0
        %565 = vmatprep.subr.bf16.mxu0 0
        %566 = vmatpush1.bf16.msra.mxu0 0
        %567 = vmatprep.subr.bf16.mxu0 0
        %568 = vmatpush1.bf16.msra.mxu0 0
        %569 = vmatprep.subr.bf16.mxu0 0
        %570 = vmatpush1.bf16.msra.mxu0 0
        %571 = vmatprep.mubr.bf16.mxu0 0
        %572 = vmatmul.mubr.bf16.gmra.mrb[0].mxu0 %v537
        %v573 = vpop.f32.mrb[0].mxu0
        %v574 = vadd.f32 %v507, %v573
        %v575 = vpop.f32.mrb[0].mxu0
        %v576 = vpop.f32.mrb[0].mxu0
        %v577 = vpop.f32.mrb[0].mxu0
        %578 = vdwg.mxu0
        %v579 = vmul.f32 %v574, 0.5
        %v580 = vxor.u32 %v579, 2147483648
        %v581 = vmul.f32 %v580, 1.442695
        %v582 = vpow.pop %v581
        %v583 = vadd.f32 %v582, 1.0
        %v584 = vrcp.pop %v583
        %v585 = vmul.f32 1.0, %v584
        %v586 = vmul.f32 %v585, 2.0
        %v587 = vadd.f32 %v586, 0.02
        %v588 = vld [vmem:[%s305] sm:$0x3]
        %590 = vrot.lane.b32.xlu0 %v588, 8
        %v591 = vpop.permute.xlu0 %590
        %v593 = vmul.f32 %v587, %v591
        %595 = vrot.lane.b32.xlu0 %v593, 120
        %v596 = vpop.permute.xlu0 %595
        %v598 = vadd.f32 %v574, %v596
        %600 = vrot.lane.b32.xlu0 %v492, 64
        %v601 = vpop.permute.xlu0 %600
        %vm603 = vcmask 517120
        %604 = vst.msk [vmem:[#allocation2] sm:$0x3] %vm603, %v601
        %606 = vrot.lane.b32.xlu0 %v574, 64
        %v607 = vpop.permute.xlu0 %606
        %610 = vrot.lane.b32.xlu0 %v587, 64
        %v611 = vpop.permute.xlu0 %610
        %614 = vrot.lane.b32.xlu0 %v598, 80
        %v615 = vpop.permute.xlu0 %614
        %v617 = vsel %vm320, %v601, %v607
        %vm618 = vcmask 588800
        %v619 = vsel %vm618, %v617, %v611
        %vm620 = vcmask 654336
        %v621 = vsel %vm620, %v619, %v615
        %vm622 = vcmask 719872
        %v623 = vsel %vm622, %v621, 0.0
        %624 = vst [vmem:[%s297] sm:$0x3] %v623
        %s625 = sand.u32 %s187, 1
        %s626 = scalar_lea.sflag [#allocation5], %s625
        %s627 = sand.u32 %s187, 1
        %s628 = smul.addr %s627, 2
        %s629 = scalar_lea.vmem [#allocation6], %s628
        // Predicated region
        $region57: #{tpu_custom_call.1} parent=47 // pred_check
          %p630 = pneg %p197
        $region58: #{tpu_custom_call.1} parent=47 // pred_check_branch
          %632 = sbr.rel (%p630) target = $region60
        $region59: #{tpu_custom_call.1} parent=47 // pred_region
          %s634 = ssub.s32 32, 32
          %635 = vsyncadd %s626, %s634
          %s636 = smul.addr %s22, 32
          %s637 = scalar_lea.hbm %s7, %s636
          %s639 = sshll.u32 %s629, 4
          %s640 = int_to_ptr.vmem [resolvable:$true] %s639
          %642 = dma.vmem_to_hbm [thread:$0]  %s640, 32, %s637, %s626
        $region60: #{tpu_custom_call.1} parent=47 // pred_fallthru
          _
      $region48: #{tpu_custom_call.1} parent=5 // pred_fallthru
        _
      %p643 = scmp.le.s32.totalorder 2, %s17
      // Predicated region
      $region61: #{tpu_custom_call.1} parent=5 // pred_check
        %p644 = pneg %p643
      $region62: #{tpu_custom_call.1} parent=5 // pred_check_branch
        %646 = sbr.rel (%p644) target = $region64
      $region63: #{tpu_custom_call.1} parent=5 // pred_region
        %s647 = ssub.s32 %s17, 2
        // Predicated region
        $region65: #{tpu_custom_call.1} parent=63 // pred_check
          %p648 = pneg %p203
        $region66: #{tpu_custom_call.1} parent=63 // pred_check_branch
          %650 = sbr.rel (%p648) target = $region68
        $region67: #{tpu_custom_call.1} parent=63 // pred_region
          %s651 = sand.u32 %s188, 1
          %s652 = scalar_lea.sflag [#allocation5], %s651
          %s653 = sand.u32 %s188, 1
          %s654 = smul.addr %s653, 2
          %s655 = scalar_lea.vmem [#allocation6], %s654
          %656 = dma.done %s652, 32
        $region68: #{tpu_custom_call.1} parent=63 // pred_fallthru
          _
      $region64: #{tpu_custom_call.1} parent=5 // pred_fallthru
        _
    $region6: #{tpu_custom_call.1} parent=1 // loop_footer
      %s21 = sadd.s32 1, %s17
    $region7: #{tpu_custom_call.1} parent=1 // loop_footer_branch
      %16 = sbr.rel target = $region3
    $region8: #{tpu_custom_call.1} parent=1 // loop_exit
      _
    %657 = vsyncpa [#allocation4], 1
    %s658 = scalar_lea.sflag [#allocation4], 1
    %659 = vsyncpa %s658, 1
    %660 = vsyncpa [#allocation5], 1
    %s661 = scalar_lea.sflag [#allocation5], 1
    %662 = vsyncpa %s661, 1

</llo_original>
